<compile_context>
chip_gen: v7x
topology: tpu7x:2x2x1
jax: 0.10.0
libtpu: 0.0.40
codegen_flags: <defaults>
</compile_context>

<pallas_src>
import math

import numpy as np
import jax
import jax.numpy as jnp
from jax.experimental import pallas as pl
from jax.experimental.pallas import tpu as pltpu

COMPUTE_DTYPE = jnp.bfloat16
_VMEM_LIMIT = 32 * 1024 * 1024
_LN_EPS = 1e-12


# ----------------------------------------------------------------------------
# Helpers
# ----------------------------------------------------------------------------

def _pick_tile(dim, targets=(512, 256, 128)):
    """Largest target tile that divides `dim`, else the full dim (always legal)."""
    for t in targets:
        if dim >= t and dim % t == 0:
            return t
    return dim


def _cost(flops, transcendentals, arrays, out_nbytes):
    nbytes = int(out_nbytes) + sum(int(a.size) * a.dtype.itemsize for a in arrays)
    return pl.CostEstimate(flops=int(flops), transcendentals=int(transcendentals),
                           bytes_accessed=int(nbytes))


def _cparams(sem):
    return pltpu.CompilerParams(dimension_semantics=sem, vmem_limit_bytes=_VMEM_LIMIT)


# ----------------------------------------------------------------------------
# Kernels
# ----------------------------------------------------------------------------

def _make_linear_kernel(activation):
    def kernel(x_ref, w_ref, b_ref, o_ref, acc_ref):
        @pl.when(pl.program_id(2) == 0)
        def _init():
            acc_ref[...] = jnp.zeros_like(acc_ref)

        acc_ref[...] += jnp.dot(x_ref[...], w_ref[...],
                                preferred_element_type=jnp.float32)

        @pl.when(pl.program_id(2) == pl.num_programs(2) - 1)
        def _fin():
            y = acc_ref[...] + b_ref[...]
            if activation == "gelu":
                # TODO(synk): HF BERT uses exact erf-GELU; tanh approx for robust TPU lowering.
                y = 0.5 * y * (1.0 + jnp.tanh(0.7978845608028654 *
                                              (y + 0.044715 * y * y * y)))
            elif activation == "tanh":
                y = jnp.tanh(y)
            o_ref[...] = y.astype(o_ref.dtype)
    return kernel


_LINEAR_KERNELS = {a: _make_linear_kernel(a) for a in ("none", "gelu", "tanh")}


def _linear_res_ln_kernel(x_ref, w_ref, b_ref, r_ref, g_ref, be_ref, o_ref, acc_ref):
    """y = LayerNorm(x @ w + b + residual) fused epilogue (full feature dim in block)."""
    @pl.when(pl.program_id(1) == 0)
    def _init():
        acc_ref[...] = jnp.zeros_like(acc_ref)

    acc_ref[...] += jnp.dot(x_ref[...], w_ref[...],
                            preferred_element_type=jnp.float32)

    @pl.when(pl.program_id(1) == pl.num_programs(1) - 1)
    def _fin():
        y = acc_ref[...] + b_ref[...] + r_ref[...].astype(jnp.float32)
        mu = jnp.mean(y, axis=-1, keepdims=True)
        var = jnp.mean(jnp.square(y - mu), axis=-1, keepdims=True)
        yn = (y - mu) * jax.lax.rsqrt(var + _LN_EPS)
        o_ref[...] = (yn * g_ref[...] + be_ref[...]).astype(o_ref.dtype)


def _layernorm_kernel(x_ref, g_ref, b_ref, o_ref):
    x = x_ref[...].astype(jnp.float32)
    mu = jnp.mean(x, axis=-1, keepdims=True)
    var = jnp.mean(jnp.square(x - mu), axis=-1, keepdims=True)
    y = (x - mu) * jax.lax.rsqrt(var + _LN_EPS)
    o_ref[...] = (y * g_ref[...] + b_ref[...]).astype(o_ref.dtype)


def _make_attention_kernel(num_heads, head_dim, scale):
    H = num_heads * head_dim

    def kernel(qkv_ref, m_ref, o_ref):
        qkv = qkv_ref[...]                                  # (1, S, 3H) bf16
        mask = m_ref[...].astype(jnp.float32)[0]            # (1, S) additive mask
        parts = []
        for h in range(num_heads):                          # static unroll over heads
            lo = h * head_dim
            q = qkv[0, :, lo:lo + head_dim]
            k = qkv[0, :, H + lo:H + lo + head_dim]
            v = qkv[0, :, 2 * H + lo:2 * H + lo + head_dim]
            s = jnp.dot(q, k.T, preferred_element_type=jnp.float32) * scale + mask
            s = s - jnp.max(s, axis=-1, keepdims=True)
            p = jnp.exp(s)
            p = p * pl.reciprocal(jnp.sum(p, axis=-1, keepdims=True), approx=True)
            ctx = jnp.dot(p.astype(v.dtype), v, preferred_element_type=jnp.float32)
            parts.append(ctx.astype(o_ref.dtype))
        # single lane-dense (S, H) store; heads are contiguous column blocks, so no
        # JAX-side merge transpose is needed afterwards.
        o_ref[...] = jnp.concatenate(parts, axis=-1)[None]
    return kernel


def _fc_sf_kernel(x_ref, w1_ref, b1_ref, w2_ref, b2_ref, o_ref):
    h = jnp.dot(x_ref[...], w1_ref[...], preferred_element_type=jnp.float32) + b1_ref[...]
    h = jnp.maximum(h, 0.0)
    # Second matmul (H -> 1) as a VPU/XLU lane reduction: avoids an N=1 MXU pass
    # and a 1-lane-wide masked-store output layout.
    y = jnp.sum(h * w2_ref[...], axis=-1, keepdims=True) + b2_ref[...]
    o_ref[...] = y.astype(o_ref.dtype)


# ----------------------------------------------------------------------------
# Wrappers (reshape / spec glue only)
# ----------------------------------------------------------------------------

def linear(x, w, b, activation="none"):
    lead = x.shape[:-1]
    K = x.shape[-1]
    N = w.shape[1]
    M = int(np.prod(lead))
    x2 = x.reshape(M, K).astype(COMPUTE_DTYPE)
    w = w.astype(COMPUTE_DTYPE)
    b2 = b.astype(jnp.float32).reshape(1, N)

    tm = _pick_tile(M)
    tn = _pick_tile(N)
    tk = _pick_tile(K, (512, 256))
    grid = (M // tm, N // tn, K // tk)
    trans = M * N if activation in ("gelu", "tanh") else 0

    out = pl.pallas_call(
        _LINEAR_KERNELS[activation],
        out_shape=jax.ShapeDtypeStruct((M, N), COMPUTE_DTYPE),
        grid_spec=pltpu.PrefetchScalarGridSpec(
            num_scalar_prefetch=0,
            grid=grid,
            in_specs=[
                pl.BlockSpec((tm, tk), lambda i, j, k: (i, k)),
                # weight block index ignores the row axis -> stays resident across rows
                pl.BlockSpec((tk, tn), lambda i, j, k: (k, j)),
                pl.BlockSpec((1, tn), lambda i, j, k: (0, j)),
            ],
            out_specs=pl.BlockSpec((tm, tn), lambda i, j, k: (i, j)),
            scratch_shapes=[pltpu.VMEM((tm, tn), jnp.float32)],
        ),
        compiler_params=_cparams(("parallel", "parallel", "arbitrary")),
        cost_estimate=_cost(2 * M * N * K, trans, (x2, w, b2), M * N * 2),
    )(x2, w, b2)
    return out.reshape(*lead, N)


def linear_res_ln(x, w, b, residual, gamma, beta):
    """LayerNorm(x @ w + b + residual) with fused epilogue."""
    lead = x.shape[:-1]
    K = x.shape[-1]
    N = w.shape[1]
    M = int(np.prod(lead))
    x2 = x.reshape(M, K).astype(COMPUTE_DTYPE)
    r2 = residual.reshape(M, N).astype(COMPUTE_DTYPE)
    w = w.astype(COMPUTE_DTYPE)
    b2 = b.astype(jnp.float32).reshape(1, N)
    g2 = gamma.astype(jnp.float32).reshape(1, N)
    be2 = beta.astype(jnp.float32).reshape(1, N)

    tm = _pick_tile(M)
    tk = _pick_tile(K, (512, 256))
    grid = (M // tm, K // tk)

    out = pl.pallas_call(
        _linear_res_ln_kernel,
        out_shape=jax.ShapeDtypeStruct((M, N), COMPUTE_DTYPE),
        grid_spec=pltpu.PrefetchScalarGridSpec(
            num_scalar_prefetch=0,
            grid=grid,
            in_specs=[
                pl.BlockSpec((tm, tk), lambda i, k: (i, k)),
                pl.BlockSpec((tk, N), lambda i, k: (k, 0)),
                pl.BlockSpec((1, N), lambda i, k: (0, 0)),
                pl.BlockSpec((tm, N), lambda i, k: (i, 0)),
                pl.BlockSpec((1, N), lambda i, k: (0, 0)),
                pl.BlockSpec((1, N), lambda i, k: (0, 0)),
            ],
            out_specs=pl.BlockSpec((tm, N), lambda i, k: (i, 0)),
            scratch_shapes=[pltpu.VMEM((tm, N), jnp.float32)],
        ),
        compiler_params=_cparams(("parallel", "arbitrary")),
        cost_estimate=_cost(2 * M * N * K + 8 * M * N, 0, (x2, w, r2), M * N * 2),
    )(x2, w, b2, r2, g2, be2)
    return out.reshape(*lead, N)


def layernorm(x, g, b, out_dtype=COMPUTE_DTYPE):
    lead = x.shape[:-1]
    N = x.shape[-1]
    M = int(np.prod(lead))
    x2 = x.reshape(M, N)
    g2 = g.astype(jnp.float32).reshape(1, N)
    b2 = b.astype(jnp.float32).reshape(1, N)
    tm = _pick_tile(M)

    out = pl.pallas_call(
        _layernorm_kernel,
        out_shape=jax.ShapeDtypeStruct((M, N), out_dtype),
        grid_spec=pltpu.PrefetchScalarGridSpec(
            num_scalar_prefetch=0,
            grid=(M // tm,),
            in_specs=[
                pl.BlockSpec((tm, N), lambda i: (i, 0)),
                pl.BlockSpec((1, N), lambda i: (0, 0)),
                pl.BlockSpec((1, N), lambda i: (0, 0)),
            ],
            out_specs=pl.BlockSpec((tm, N), lambda i: (i, 0)),
        ),
        compiler_params=_cparams(("parallel",)),
        cost_estimate=_cost(8 * M * N, 0, (x2,), M * N * jnp.dtype(out_dtype).itemsize),
    )(x2, g2, b2)
    return out.reshape(*lead, N)


def attention(qkv, mask_add, num_heads):
    B, S, H3 = qkv.shape
    H = H3 // 3
    Dh = H // num_heads
    kernel = _make_attention_kernel(num_heads, Dh, 1.0 / math.sqrt(Dh))

    out = pl.pallas_call(
        kernel,
        out_shape=jax.ShapeDtypeStruct((B, S, H), qkv.dtype),
        grid_spec=pltpu.PrefetchScalarGridSpec(
            num_scalar_prefetch=0,
            grid=(B,),
            in_specs=[
                pl.BlockSpec((1, S, H3), lambda b: (b, 0, 0)),
                pl.BlockSpec((1, 1, S), lambda b: (b, 0, 0)),
            ],
            out_specs=pl.BlockSpec((1, S, H), lambda b: (b, 0, 0)),
        ),
        compiler_params=_cparams(("parallel",)),
        cost_estimate=_cost(4 * B * num_heads * S * S * Dh,
                            B * num_heads * S * S,
                            (qkv, mask_add), B * S * H * 2),
    )(qkv, mask_add)
    return out


def fc_sf_forward(p, x):
    lead = x.shape[:-1]
    K = x.shape[-1]
    Hh = p["w1"].shape[1]
    M = int(np.prod(lead))
    x2 = x.reshape(M, K).astype(COMPUTE_DTYPE)
    tm = _pick_tile(M)

    out = pl.pallas_call(
        _fc_sf_kernel,
        out_shape=jax.ShapeDtypeStruct((M, 1), jnp.float32),
        grid_spec=pltpu.PrefetchScalarGridSpec(
            num_scalar_prefetch=0,
            grid=(M // tm,),
            in_specs=[
                pl.BlockSpec((tm, K), lambda i: (i, 0)),
                pl.BlockSpec((K, Hh), lambda i: (0, 0)),
                pl.BlockSpec((1, Hh), lambda i: (0, 0)),
                pl.BlockSpec((1, Hh), lambda i: (0, 0)),
                pl.BlockSpec((1, 1), lambda i: (0, 0)),
            ],
            out_specs=pl.BlockSpec((tm, 1), lambda i: (i, 0)),
        ),
        compiler_params=_cparams(("parallel",)),
        cost_estimate=_cost(2 * M * K * Hh + 2 * M * Hh, 0, (x2, p["w1"]), M * 4),
    )(x2, p["w1"], p["b1"].reshape(1, Hh), p["w2_row"], p["b2"].reshape(1, 1))
    return out.reshape(*lead, 1)


# ----------------------------------------------------------------------------
# Model forward (mirrors BertSupportNet -> SupportNet -> SimplePredictionLayer).
# ----------------------------------------------------------------------------

def bert_layer(x, mask_add, p, num_heads):
    qkv = linear(x, p["qkv_w"], p["qkv_b"])                         # fused Q/K/V projection
    ctx = attention(qkv, mask_add, num_heads)
    x = linear_res_ln(ctx, p["ao_w"], p["ao_b"], x, p["ln1_g"], p["ln1_b"])
    inter = linear(x, p["i_w"], p["i_b"], activation="gelu")
    x = linear_res_ln(inter, p["o_w"], p["o_b"], x, p["ln2_g"], p["ln2_b"])
    return x


def bert_encoder_forward(p, input_ids, token_type_ids, attention_mask, num_heads):
    B, S = input_ids.shape
    emb = (p["word_emb"][input_ids].astype(jnp.float32)
           + p["type_emb"][token_type_ids].astype(jnp.float32)
           + p["pos_emb"][:S][None, :, :].astype(jnp.float32))
    x = layernorm(emb, p["emb_ln_g"], p["emb_ln_b"])
    # HF-style extended additive mask: (1 - mask) * -10000, shape (B, 1, S)
    mask_add = (1.0 - attention_mask.astype(jnp.float32))[:, None, :] * -10000.0
    for lp in p["layers"]:
        x = bert_layer(x, mask_add, lp, num_heads)
    pooled = linear(x[:, 0, :], p["pool_w"], p["pool_b"], activation="tanh")
    return x, pooled


def cross_passage_encoder_forward(p, vectors_in, num_heads):
    B, S, _ = vectors_in.shape
    mask_add = jnp.zeros((B, 1, S), jnp.float32)   # extended_attention_mask = zeros
    x = vectors_in
    for lp in p["layers"]:
        x = bert_layer(x, mask_add, lp, num_heads)
    return x


def simple_prediction_layer_forward(params, batch, input_state, num_heads):
    qlen = batch["query_length"]                 # python int (static)
    sent_start = batch["start_position"]         # (B, num_sent) int
    sent_end = batch["end_position"]             # (B, num_sent) int
    ctx = input_state[:, qlen:, :]
    all_tok_vecs = cross_passage_encoder_forward(params["cross"], ctx, num_heads)
    # PyTorch loop: `flag` is never cleared, so every iteration overwrites and only
    # the positions of the LAST batch element survive.
    start_vectors = jnp.take(all_tok_vecs, sent_start[-1], axis=1)
    end_vectors = jnp.take(all_tok_vecs, sent_end[-1], axis=1)
    start_end_concatenated = jnp.concatenate([start_vectors, end_vectors], axis=-1)
    sp_logits = fc_sf_forward(params["fc_sf"], start_end_concatenated)
    return sp_logits


def bert_support_net_forward(params, batch, num_heads):
    doc_ids = batch["context_idxs"]
    doc_mask = batch["context_mask"]
    segment_ids = batch["segment_idxs"]
    seq_out, pooled = bert_encoder_forward(params["encoder"], doc_ids, segment_ids,
                                           doc_mask, num_heads)
    batch["context_encoding"] = seq_out
    batch["pooled"] = pooled                      # set but unused downstream (as in reference)
    return simple_prediction_layer_forward(params, batch, batch["context_encoding"], num_heads)


# ----------------------------------------------------------------------------
# Deterministic synthetic parameter initialization (weights bf16, bias/LN f32).
# ----------------------------------------------------------------------------

def _dense_init(key, fan_in, fan_out):
    w = (0.02 * jax.random.normal(key, (fan_in, fan_out), jnp.float32)).astype(COMPUTE_DTYPE)
    b = jnp.zeros((fan_out,), jnp.float32)
    return w, b


def init_layer_params(key, H, I):
    ks = jax.random.split(key, 6)
    q_w, q_b = _dense_init(ks[0], H, H)
    k_w, k_b = _dense_init(ks[1], H, H)
    v_w, v_b = _dense_init(ks[2], H, H)
    p = {}
    p["qkv_w"] = jnp.concatenate([q_w, k_w, v_w], axis=1)          # (H, 3H)
    p["qkv_b"] = jnp.concatenate([q_b, k_b, v_b], axis=0)          # (3H,)
    p["ao_w"], p["ao_b"] = _dense_init(ks[3], H, H)
    p["i_w"], p["i_b"] = _dense_init(ks[4], H, I)
    p["o_w"], p["o_b"] = _dense_init(ks[5], I, H)
    p["ln1_g"] = jnp.ones((H,), jnp.float32)
    p["ln1_b"] = jnp.zeros((H,), jnp.float32)
    p["ln2_g"] = jnp.ones((H,), jnp.float32)
    p["ln2_b"] = jnp.zeros((H,), jnp.float32)
    return p


def init_params(key, vocab, max_pos, H, I, n_layers_enc, n_layers_cross):
    k_enc, k_cross, k_emb, k_pool, k_fc = jax.random.split(key, 5)
    enc = {}
    ke = jax.random.split(k_emb, 3)
    enc["word_emb"] = (0.02 * jax.random.normal(ke[0], (vocab, H), jnp.float32)).astype(COMPUTE_DTYPE)
    enc["pos_emb"] = (0.02 * jax.random.normal(ke[1], (max_pos, H), jnp.float32)).astype(COMPUTE_DTYPE)
    enc["type_emb"] = (0.02 * jax.random.normal(ke[2], (2, H), jnp.float32)).astype(COMPUTE_DTYPE)
    enc["emb_ln_g"] = jnp.ones((H,), jnp.float32)
    enc["emb_ln_b"] = jnp.zeros((H,), jnp.float32)
    enc["layers"] = [init_layer_params(k, H, I) for k in jax.random.split(k_enc, n_layers_enc)]
    enc["pool_w"], enc["pool_b"] = _dense_init(k_pool, H, H)

    cross = {"layers": [init_layer_params(k, H, I)
                        for k in jax.random.split(k_cross, n_layers_cross)]}

    kf1, kf2 = jax.random.split(k_fc)
    fc_sf = {}
    fc_sf["w1"], fc_sf["b1"] = _dense_init(kf1, 2 * H, H)
    fc_sf["w2_row"] = 0.02 * jax.random.normal(kf2, (1, H), jnp.float32)   # (1, H) row vector
    fc_sf["b2"] = jnp.zeros((1,), jnp.float32)

    return {"encoder": enc, "cross": cross, "fc_sf": fc_sf}


# ----------------------------------------------------------------------------
# Main.
# ----------------------------------------------------------------------------

if __name__ == "__main__":
    B, S, H, num_heads, I = 2, 16, 32, 4, 64
    vocab, max_pos = 100, 64
    n_layers_enc, n_layers_cross = 2, 2
    qlen, num_sent = 4, 3
    ctx_len = S - qlen

    root = jax.random.PRNGKey(0)
    k_params, k_ids, k_start, k_end = jax.random.split(root, 4)

    params = init_params(k_params, vocab, max_pos, H, I, n_layers_enc, n_layers_cross)

    context_idxs = jax.random.randint(k_ids, (B, S), 0, vocab, dtype=jnp.int32)
    context_mask = jnp.ones((B, S), jnp.float32).at[:, S - 2:].set(0.0)  # last 2 tokens padded
    segment_idxs = jnp.concatenate(
        [jnp.zeros((B, qlen), jnp.int32), jnp.ones((B, S - qlen), jnp.int32)], axis=1)
    start_position = jax.random.randint(k_start, (B, num_sent), 0, ctx_len, dtype=jnp.int32)
    end_position = jax.random.randint(k_end, (B, num_sent), 0, ctx_len, dtype=jnp.int32)

    batch = {
        "context_idxs": context_idxs,
        "context_mask": context_mask,
        "segment_idxs": segment_idxs,
        "query_mapping": jnp.zeros((B, S), jnp.float32),          # unused by the forward path
        "all_mapping": jnp.zeros((B, S, num_sent), jnp.float32),  # unused
        "query_length": qlen,
        "start_position": start_position,
        "end_position": end_position,
    }

    sp_logits = bert_support_net_forward(params, batch, num_heads)
    sp_logits = jax.block_until_ready(sp_logits)
    assert sp_logits.shape == (B, num_sent, 1)
    assert bool(jnp.all(jnp.isfinite(sp_logits)))
    print("KERNEL_OK")
</pallas_src>

<mosaic_0001>
module attributes {stable_mosaic.version = 11 : i64} {
  func.func @_layernorm_kernel(%arg0: i32, %arg1: memref<32x32xf32, #tpu.memory_space<vmem>>, %arg2: memref<1x32xf32, #tpu.memory_space<vmem>>, %arg3: memref<1x32xf32, #tpu.memory_space<vmem>>, %arg4: memref<32x32xbf16, #tpu.memory_space<vmem>>) attributes {dimension_semantics = [#tpu.dimension_semantics<parallel>], iteration_bounds = array<i64: 1>, scalar_prefetch = 0 : i64, scratch_operands = 0 : i64, tpu.core_type = #tpu.core_type<tc>, window_params = [{transform_indices = @transform_0, window_bounds = array<i64: 32, 32>}, {pipeline_mode = #tpu.pipeline_mode<synchronous>, transform_indices = @transform_1, window_bounds = array<i64: 1, 32>}, {pipeline_mode = #tpu.pipeline_mode<synchronous>, transform_indices = @transform_2, window_bounds = array<i64: 1, 32>}, {transform_indices = @transform_3, window_bounds = array<i64: 32, 32>}]} {
    %c0 = arith.constant 0 : index
    %c0_0 = arith.constant 0 : index
    %0 = vector.load %arg1[%c0, %c0_0] : memref<32x32xf32, #tpu.memory_space<vmem>>, vector<32x32xf32>
    %cst = arith.constant dense<0.000000e+00> : vector<32xf32>
    %1 = vector.multi_reduction <add>, %0, %cst [1] : vector<32x32xf32> to vector<32xf32>
    %2 = vector.shape_cast %1 : vector<32xf32> to vector<32x1xf32>
    %cst_1 = arith.constant 3.200000e+01 : f32
    %3 = vector.broadcast %cst_1 : f32 to vector<32x1xf32>
    %4 = arith.divf %2, %3 : vector<32x1xf32>
    %5 = vector.broadcast %4 : vector<32x1xf32> to vector<32x32xf32>
    %6 = arith.subf %0, %5 : vector<32x32xf32>
    %7 = arith.mulf %6, %6 : vector<32x32xf32>
    %cst_2 = arith.constant dense<0.000000e+00> : vector<32xf32>
    %8 = vector.multi_reduction <add>, %7, %cst_2 [1] : vector<32x32xf32> to vector<32xf32>
    %9 = vector.shape_cast %8 : vector<32xf32> to vector<32x1xf32>
    %cst_3 = arith.constant 3.200000e+01 : f32
    %10 = vector.broadcast %cst_3 : f32 to vector<32x1xf32>
    %11 = arith.divf %9, %10 : vector<32x1xf32>
    %12 = vector.broadcast %4 : vector<32x1xf32> to vector<32x32xf32>
    %13 = arith.subf %0, %12 : vector<32x32xf32>
    %cst_4 = arith.constant 9.99999996E-13 : f32
    %14 = vector.broadcast %cst_4 : f32 to vector<32x1xf32>
    %15 = arith.addf %11, %14 : vector<32x1xf32>
    %16 = math.rsqrt %15 : vector<32x1xf32>
    %17 = vector.broadcast %16 : vector<32x1xf32> to vector<32x32xf32>
    %18 = arith.mulf %13, %17 : vector<32x32xf32>
    %c0_5 = arith.constant 0 : index
    %c0_6 = arith.constant 0 : index
    %19 = vector.load %arg2[%c0_5, %c0_6] : memref<1x32xf32, #tpu.memory_space<vmem>>, vector<1x32xf32>
    %20 = vector.broadcast %19 : vector<1x32xf32> to vector<32x32xf32>
    %21 = arith.mulf %18, %20 : vector<32x32xf32>
    %c0_7 = arith.constant 0 : index
    %c0_8 = arith.constant 0 : index
    %22 = vector.load %arg3[%c0_7, %c0_8] : memref<1x32xf32, #tpu.memory_space<vmem>>, vector<1x32xf32>
    %23 = vector.broadcast %22 : vector<1x32xf32> to vector<32x32xf32>
    %24 = arith.addf %21, %23 : vector<32x32xf32>
    %25 = arith.truncf %24 : vector<32x32xf32> to vector<32x32xbf16>
    %c0_9 = arith.constant 0 : index
    %c0_10 = arith.constant 0 : index
    %26 = vector.load %arg4[%c0_9, %c0_10] : memref<32x32xbf16, #tpu.memory_space<vmem>>, vector<32x32xbf16>
    tpu.vector_store %arg4[%c0_9, %c0_10], %25 {strides = array<i32>} : memref<32x32xbf16, #tpu.memory_space<vmem>>, vector<32x32xbf16>,
    return
  }
  func.func @transform_0(%arg0: i32) -> (i32, i32) {
    %c0_i32 = arith.constant 0 : i32
    %c0_i32_0 = arith.constant 0 : i32
    return %arg0, %c0_i32 : i32, i32
  }
  func.func @transform_1(%arg0: i32) -> (i32, i32) {
    %c0_i32 = arith.constant 0 : i32
    %c0_i32_0 = arith.constant 0 : i32
    %c0_i32_1 = arith.constant 0 : i32
    return %c0_i32, %c0_i32_0 : i32, i32
  }
  func.func @transform_2(%arg0: i32) -> (i32, i32) {
    %c0_i32 = arith.constant 0 : i32
    %c0_i32_0 = arith.constant 0 : i32
    %c0_i32_1 = arith.constant 0 : i32
    return %c0_i32, %c0_i32_0 : i32, i32
  }
  func.func @transform_3(%arg0: i32) -> (i32, i32) {
    %c0_i32 = arith.constant 0 : i32
    %c0_i32_0 = arith.constant 0 : i32
    return %arg0, %c0_i32 : i32, i32
  }
}

</mosaic_0001>

<llo_original>
// kernel: tpu_custom_call.1
$region0: #{tpu_custom_call.1}
  #allocation0 [shape = 'u32[]', space=smem, size = 0x4, offset = 0x4, fixed_abs, tag = 'smem constant byte address 0x4 - core index']
  #allocation1 [shape = 'u32[144,128]{1,0:T(1,128)}', space=vmem, size = 0x12000, scoped, tag = 'internal scratch']
  %s0 = inlined_call_operand.hbm [shape: f32[32,32], index: 0, kind: input, shape index: {}]
  %s1 = inlined_call_operand.vmem [shape: f32[1,32], index: 1, kind: input, shape index: {}]
  %s2 = inlined_call_operand.vmem [shape: f32[1,32], index: 2, kind: input, shape index: {}]
  %s3 = inlined_call_operand.hbm [shape: bf16[32,32], index: 3, kind: output, shape index: {}]
  %s4 = sld [smem:[#allocation0]]
  $region26: #{tpu_custom_call.1} parent=0
    _
  %s6 = ssub.s32 1, %s4
  %s7 = scalar_select 0, %s6, %s4
  $region1: #{tpu_custom_call.1} parent=0
    #allocation2 [shape = 'u8[16384]{0}', space=vmem, size = 0x4000, scoped, tag = 'input window, operand 0, single buffered']
    #allocation3 [shape = 's32[1]{0}', space=sflag, size = 0x4, scoped, tag = 'scoped memory for tpu_custom_call.1']
    #allocation4 [shape = 's32[1]{0}', space=sflag, size = 0x4, scoped, tag = 'scoped memory for tpu_custom_call.1']
    #allocation5 [shape = 'u8[8192]{0}', space=vmem, size = 0x2000, scoped, tag = 'output window, operand 0, single buffered']
    %8 = vsyncpa [#allocation3], 0
    %9 = vsyncpa [#allocation4], 0
    // Predicated region
    $region2: #{tpu_custom_call.1} parent=1 // pred_check
      _
    $region3: #{tpu_custom_call.1} parent=1 // pred_check_branch
      %11 = sbr.rel (0) target = $region5
    $region4: #{tpu_custom_call.1} parent=1 // pred_region
      %s13 = ssub.s32 512, 512
      %14 = vsyncadd [#allocation3], %s13
      %s15 = sshll.u32 [#allocation2], 4
      %s16 = int_to_ptr.vmem [resolvable:$true] %s15
      %21 = dma.hbm_to_vmem [thread:$0]  %s0, 512, %s16, [#allocation3], 128, 128, 8
    $region5: #{tpu_custom_call.1} parent=1 // pred_fallthru
      _
    // Predicated region
    $region6: #{tpu_custom_call.1} parent=1 // pred_check
      _
    $region7: #{tpu_custom_call.1} parent=1 // pred_check_branch
      %23 = sbr.rel (0) target = $region9
    $region8: #{tpu_custom_call.1} parent=1 // pred_region
      _
    $region9: #{tpu_custom_call.1} parent=1 // pred_fallthru
      _
    // Predicated region
    $region10: #{tpu_custom_call.1} parent=1 // pred_check
      _
    $region11: #{tpu_custom_call.1} parent=1 // pred_check_branch
      %25 = sbr.rel (0) target = $region13
    $region12: #{tpu_custom_call.1} parent=1 // pred_region
      _
    $region13: #{tpu_custom_call.1} parent=1 // pred_fallthru
      _
    // Predicated region
    $region14: #{tpu_custom_call.1} parent=1 // pred_check
      _
    $region15: #{tpu_custom_call.1} parent=1 // pred_check_branch
      %27 = sbr.rel (0) target = $region17
    $region16: #{tpu_custom_call.1} parent=1 // pred_region
      %28 = dma.done [#allocation3], 512
    $region17: #{tpu_custom_call.1} parent=1 // pred_fallthru
      _
    %v29 = vld [vmem:[#allocation2] sm:$0xff]
    %v30 = vld [vmem:[#allocation2 + $0x8] sm:$0xff]
    %v31 = vld [vmem:[#allocation2 + $0x10] sm:$0xff]
    %v32 = vld [vmem:[#allocation2 + $0x18] sm:$0xff]
    %vm33 = vcmask 261120
    %v34 = vsel %vm33, %v29, 0.0
    %35 = vadd.xlane.f32.xlu0 %v34
    %v36 = vpop.xlane.xlu0 %35
    %v37 = vsel %vm33, %v30, 0.0
    %38 = vadd.xlane.f32.xlu0 %v37
    %v39 = vpop.xlane.xlu0 %38
    %v40 = vsel %vm33, %v31, 0.0
    %41 = vadd.xlane.f32.xlu0 %v40
    %v42 = vpop.xlane.xlu0 %41
    %v43 = vsel %vm33, %v32, 0.0
    %44 = vadd.xlane.f32.xlu0 %v43
    %v45 = vpop.xlane.xlu0 %44
    %v46 = vrcp.pop 32.0
    %v47 = vmul.f32 %v36, %v46
    %v48 = vmul.f32 %v39, %v46
    %v49 = vmul.f32 %v42, %v46
    %v50 = vmul.f32 %v45, %v46
    %v51 = vsub.f32 %v29, %v47
    %v52 = vsub.f32 %v30, %v48
    %v53 = vsub.f32 %v31, %v49
    %v54 = vsub.f32 %v32, %v50
    %v55 = vmul.f32 %v51, %v51
    %v56 = vmul.f32 %v52, %v52
    %v57 = vmul.f32 %v53, %v53
    %v58 = vmul.f32 %v54, %v54
    %v59 = vsel %vm33, %v55, 0.0
    %60 = vadd.xlane.f32.xlu0 %v59
    %v61 = vpop.xlane.xlu0 %60
    %v62 = vsel %vm33, %v56, 0.0
    %63 = vadd.xlane.f32.xlu0 %v62
    %v64 = vpop.xlane.xlu0 %63
    %v65 = vsel %vm33, %v57, 0.0
    %66 = vadd.xlane.f32.xlu0 %v65
    %v67 = vpop.xlane.xlu0 %66
    %v68 = vsel %vm33, %v58, 0.0
    %69 = vadd.xlane.f32.xlu0 %v68
    %v70 = vpop.xlane.xlu0 %69
    %v71 = vmul.f32 %v61, %v46
    %v72 = vmul.f32 %v64, %v46
    %v73 = vmul.f32 %v67, %v46
    %v74 = vmul.f32 %v70, %v46
    %v75 = vadd.f32 %v71, 1e-12
    %v76 = vadd.f32 %v72, 1e-12
    %v77 = vadd.f32 %v73, 1e-12
    %v78 = vadd.f32 %v74, 1e-12
    %v79 = vrsqrt.pop %v75
    %v80 = vrsqrt.pop %v76
    %v81 = vrsqrt.pop %v77
    %v82 = vrsqrt.pop %v78
    %v83 = vmul.f32 %v51, %v79
    %v84 = vmul.f32 %v52, %v80
    %v85 = vmul.f32 %v53, %v81
    %v86 = vmul.f32 %v54, %v82
    %v87 = vld [vmem:[%s1] sm:$0x1]
    %v89 = vlaneseq
    %v90 = vshrl.u32 %v89, 7
    %v91 = vsub.s32 0, %v90
    %v92 = vrot.slane %v87, %v91
    %v94 = vmul.f32 %v83, %v92
    %v95 = vmul.f32 %v84, %v92
    %v96 = vmul.f32 %v85, %v92
    %v97 = vmul.f32 %v86, %v92
    %v98 = vld [vmem:[%s2] sm:$0x1]
    %v100 = vlaneseq
    %v101 = vshrl.u32 %v100, 7
    %v102 = vsub.s32 0, %v101
    %v103 = vrot.slane %v98, %v102
    %v105 = vadd.f32 %v94, %v103
    %v106 = vadd.f32 %v95, %v103
    %v107 = vadd.f32 %v96, %v103
    %v108 = vadd.f32 %v97, %v103
    %v109 = vpack.c.bf16 %v106, %v105
    %v110 = vpack.c.bf16 %v108, %v107
    %v113 = vunpack.c.l.b16 %v109
    %v114 = vunpack.c.h.b16 %v109
    %v115 = vunpack.c.l.b16 %v110
    %v116 = vunpack.c.h.b16 %v110
    %v117 = vpack.c.b16 %v113, %v113
    %v118 = vpack.c.b16 %v114, %v114
    %v119 = vpack.c.b16 %v115, %v115
    %v120 = vpack.c.b16 %v116, %v116
    %vm125 = vcmask 257024
    %126 = vst.msk [vmem:[#allocation5] sm:$0xf] %vm125, %v117
    %127 = vst.msk [vmem:[#allocation5 + $0x4] sm:$0xf] %vm125, %v118
    %128 = vst.msk [vmem:[#allocation5 + $0x8] sm:$0xf] %vm125, %v119
    %129 = vst.msk [vmem:[#allocation5 + $0xc] sm:$0xf] %vm125, %v120
    // Predicated region
    $region18: #{tpu_custom_call.1} parent=1 // pred_check
      _
    $region19: #{tpu_custom_call.1} parent=1 // pred_check_branch
      %131 = sbr.rel (0) target = $region21
    $region20: #{tpu_custom_call.1} parent=1 // pred_region
      %s133 = ssub.s32 256, 256
      %134 = vsyncadd [#allocation4], %s133
      %s135 = sshll.u32 [#allocation5], 4
      %s136 = int_to_ptr.vmem [resolvable:$true] %s135
      %141 = dma.vmem_to_hbm [thread:$0]  %s136, 256, %s3, [#allocation4], 64, 64, 4
    $region21: #{tpu_custom_call.1} parent=1 // pred_fallthru
      _
    // Predicated region
    $region22: #{tpu_custom_call.1} parent=1 // pred_check
      _
    $region23: #{tpu_custom_call.1} parent=1 // pred_check_branch
      %143 = sbr.rel (0) target = $region25
    $region24: #{tpu_custom_call.1} parent=1 // pred_region
      %144 = dma.done [#allocation4], 256
    $region25: #{tpu_custom_call.1} parent=1 // pred_fallthru
      _
    %145 = vsyncpa [#allocation3], 1
    %146 = vsyncpa [#allocation4], 1

</llo_original>
